<compile_context>
chip_gen: v5e
topology: v5e:2x2
jax: 0.10.0
libtpu: 0.0.40
codegen_flags: <defaults>
</compile_context>

<pallas_src>
import functools

import jax
import jax.numpy as jnp
from jax.experimental import pallas as pl
from jax.experimental.pallas import tpu as pltpu


def _round_up(v, m):
    return ((v + m - 1) // m) * m


def mdn_kernel(x_ref, w_ref, b_ref, out_ref, *, n_mix):
    x = x_ref[...]

    # Single fused MXU pass for all three heads: (TB, F) @ (F, out_w) + bias.
    y = jnp.dot(x, w_ref[...], preferred_element_type=jnp.float32) + b_ref[...]

    col = jax.lax.broadcasted_iota(jnp.int32, y.shape, dimension=1)
    pi_cols = col < n_mix

    # Mask-based, numerically stable softmax over the pi columns only.
    logits = jnp.where(pi_cols, y, jnp.float32(-1e30))
    m = jnp.max(logits, axis=-1, keepdims=True)
    e = jnp.exp(logits - m)                       # masked cols underflow to 0
    den = jnp.sum(e, axis=-1, keepdims=True)
    pi = e / den                                  # exact divide (DMA-bound kernel)

    # Packed output: [pi | mu | exp(sigma_logits) | pad]; one lane-dense store.
    mu_or_sigma = jnp.where(col < 2 * n_mix, y, jnp.exp(y))
    out_ref[...] = jnp.where(pi_cols, pi, mu_or_sigma)


def mdn_forward(x, w_pi, b_pi, w_mu, b_mu, w_sigma, b_sigma, *,
                block_b=1024, compute_dtype=jnp.float32):
    """MDN forward.

    x: (B, F); w_*: (F, M) (torch Linear weight, transposed); b_*: (1, M).
    Returns (pi, mu, sigma), each (B, M) float32.
    """
    B, F = x.shape
    M = w_pi.shape[1]

    LANE = 128
    out_w = _round_up(3 * M, LANE)                # packed head width

    # Fused packed weight / bias: columns [0:M)=pi, [M:2M)=mu, [2M:3M)=sigma.
    w_all = jnp.pad(jnp.concatenate([w_pi, w_mu, w_sigma], axis=1),
                    ((0, 0), (0, out_w - 3 * M))).astype(compute_dtype)
    b_all = jnp.pad(jnp.concatenate([b_pi, b_mu, b_sigma], axis=1),
                    ((0, 0), (0, out_w - 3 * M))).astype(jnp.float32)

    x_c = x.astype(compute_dtype)

    # Batch tiling.  2 bufs * TB*(F + out_w)*4 stays far under every
    # generation's VMEM for the default TB=1024 at these widths.
    TB = max(8, min(_round_up(block_b, 8), _round_up(B, 8)))
    # If the whole batch would be a single tile, split it in two so the
    # pipeline has >=2 steps and both v7x TensorCores get work.
    if TB >= _round_up(B, 8) and B >= 16:
        TB = _round_up((B + 1) // 2, 8)

    # Only pad x when the last tile would be ragged (extra HBM pass otherwise).
    if B % TB == 0:
        x_p, Bp = x_c, B
    else:
        Bp = _round_up(B, TB)
        x_p = jnp.pad(x_c, ((0, Bp - B), (0, 0)))

    out = pl.pallas_call(
        functools.partial(mdn_kernel, n_mix=M),
        out_shape=jax.ShapeDtypeStruct((Bp, out_w), jnp.float32),
        grid=(Bp // TB,),
        in_specs=[
            pl.BlockSpec((TB, F), lambda i: (i, 0)),        # x: tiled over batch
            pl.BlockSpec((F, out_w), lambda i: (0, 0)),     # fused weights: resident
            pl.BlockSpec((1, out_w), lambda i: (0, 0)),     # fused biases: resident
        ],
        out_specs=pl.BlockSpec((TB, out_w), lambda i: (i, 0)),
        compiler_params=pltpu.CompilerParams(
            dimension_semantics=("parallel",),   # batch tiles over TCs (v7x)
            vmem_limit_bytes=48 * 1024 * 1024,   # > v5e 16 MiB default, < v7x 64 MiB
        ),
    )(x_p, w_all, b_all)

    # Contiguous, narrow lane slices of the packed 128-wide output.
    pi = out[:B, :M]
    mu = out[:B, M:2 * M]
    sigma = out[:B, 2 * M:3 * M]
    return pi, mu, sigma


def _reference(x, w_pi, b_pi, w_mu, b_mu, w_sigma, b_sigma):
    pi = jax.nn.softmax(x @ w_pi + b_pi, axis=1)
    mu = x @ w_mu + b_mu
    sigma = jnp.exp(x @ w_sigma + b_sigma)
    return pi, mu, sigma


if __name__ == "__main__":
    # Small shapes: B=96 -> TB=48, grid of 2 (exercises pipelining + megacore
    # split, no batch padding); M=5 packs into a single 128-lane output block.
    B, F, M = 96, 32, 5

    key = jax.random.PRNGKey(0)
    kx, kwp, kbp, kwm, kbm, kws, kbs = jax.random.split(key, 7)

    # Deterministic init mimicking torch.nn.Linear's U(-1/sqrt(F), 1/sqrt(F)).
    bound = 1.0 / (F ** 0.5)
    x = jax.random.normal(kx, (B, F), dtype=jnp.float32)
    w_pi = jax.random.uniform(kwp, (F, M), jnp.float32, -bound, bound)
    b_pi = jax.random.uniform(kbp, (1, M), jnp.float32, -bound, bound)
    w_mu = jax.random.uniform(kwm, (F, M), jnp.float32, -bound, bound)
    b_mu = jax.random.uniform(kbm, (1, M), jnp.float32, -bound, bound)
    w_sigma = jax.random.uniform(kws, (F, M), jnp.float32, -bound, bound)
    b_sigma = jax.random.uniform(kbs, (1, M), jnp.float32, -bound, bound)

    pi, mu, sigma = mdn_forward(x, w_pi, b_pi, w_mu, b_mu, w_sigma, b_sigma)
    jax.block_until_ready((pi, mu, sigma))

    # Sanity check against a pure-JAX reference (exact softmax divide now).
    rpi, rmu, rsigma = _reference(x, w_pi, b_pi, w_mu, b_mu, w_sigma, b_sigma)
    assert pi.shape == (B, M) and mu.shape == (B, M) and sigma.shape == (B, M)
    assert jnp.allclose(mu, rmu, atol=1e-5, rtol=1e-5)
    assert jnp.allclose(sigma, rsigma, atol=1e-5, rtol=1e-5)
    assert jnp.allclose(pi, rpi, atol=1e-5, rtol=1e-5)
    assert jnp.allclose(jnp.sum(pi, axis=1), 1.0, atol=1e-5)

    # TODO(synk): for very large F on v6e/v7x, call with
    # compute_dtype=jnp.bfloat16 to halve x/weight HBM reads (f32 accumulation
    # is preserved via preferred_element_type).

    print("KERNEL_OK")
</pallas_src>

<mosaic_0001>
module attributes {stable_mosaic.version = 11 : i64} {
  func.func @mdn_kernel(%arg0: i32, %arg1: memref<48x32xf32, #tpu.memory_space<vmem>>, %arg2: memref<32x128xf32, #tpu.memory_space<vmem>>, %arg3: memref<1x128xf32, #tpu.memory_space<vmem>>, %arg4: memref<48x128xf32, #tpu.memory_space<vmem>>) attributes {dimension_semantics = [#tpu.dimension_semantics<parallel>], iteration_bounds = array<i64: 2>, scalar_prefetch = 0 : i64, scratch_operands = 0 : i64, tpu.core_type = #tpu.core_type<tc>, window_params = [{transform_indices = @transform_0, window_bounds = array<i64: 48, 32>}, {pipeline_mode = #tpu.pipeline_mode<synchronous>, transform_indices = @transform_1, window_bounds = array<i64: 32, 128>}, {pipeline_mode = #tpu.pipeline_mode<synchronous>, transform_indices = @transform_2, window_bounds = array<i64: 1, 128>}, {transform_indices = @transform_3, window_bounds = array<i64: 48, 128>}]} {
    %c0 = arith.constant 0 : index
    %c0_0 = arith.constant 0 : index
    %0 = vector.load %arg1[%c0, %c0_0] : memref<48x32xf32, #tpu.memory_space<vmem>>, vector<48x32xf32>
    %c0_1 = arith.constant 0 : index
    %c0_2 = arith.constant 0 : index
    %1 = vector.load %arg2[%c0_1, %c0_2] : memref<32x128xf32, #tpu.memory_space<vmem>>, vector<32x128xf32>
    %cst = arith.constant dense<0.000000e+00> : vector<48x128xf32>
    %2 = tpu.matmul %0, %1, %cst {dimension_numbers = #tpu.dot_dimension_numbers<[1], [0], [0], [1], [0, 0, 1, 1], [], []>} : vector<48x32xf32>, vector<32x128xf32>, vector<48x128xf32> -> vector<48x128xf32>
    %c0_3 = arith.constant 0 : index
    %c0_4 = arith.constant 0 : index
    %3 = vector.load %arg3[%c0_3, %c0_4] : memref<1x128xf32, #tpu.memory_space<vmem>>, vector<1x128xf32>
    %4 = vector.broadcast %3 : vector<1x128xf32> to vector<48x128xf32>
    %5 = arith.addf %2, %4 : vector<48x128xf32>
    %6 = tpu.iota {dimensions = array<i32: 1>} : vector<48x128xi32>
    %c5_i32 = arith.constant 5 : i32
    %7 = vector.broadcast %c5_i32 : i32 to vector<48x128xi32>
    %8 = arith.cmpi slt, %6, %7 : vector<48x128xi32>
    %cst_5 = arith.constant -1.000000e+30 : f32
    %9 = vector.broadcast %cst_5 : f32 to vector<48x128xf32>
    %10 = arith.select %8, %5, %9 : vector<48x128xi1>, vector<48x128xf32>
    %cst_6 = arith.constant dense<0xFF800000> : vector<48xf32>
    %11 = vector.multi_reduction <maximumf>, %10, %cst_6 [1] : vector<48x128xf32> to vector<48xf32>
    %12 = vector.shape_cast %11 : vector<48xf32> to vector<48x1xf32>
    %13 = vector.broadcast %12 : vector<48x1xf32> to vector<48x128xf32>
    %14 = arith.subf %10, %13 : vector<48x128xf32>
    %15 = math.exp %14 : vector<48x128xf32>
    %cst_7 = arith.constant dense<0.000000e+00> : vector<48xf32>
    %16 = vector.multi_reduction <add>, %15, %cst_7 [1] : vector<48x128xf32> to vector<48xf32>
    %17 = vector.shape_cast %16 : vector<48xf32> to vector<48x1xf32>
    %18 = vector.broadcast %17 : vector<48x1xf32> to vector<48x128xf32>
    %19 = arith.divf %15, %18 : vector<48x128xf32>
    %c10_i32 = arith.constant 10 : i32
    %20 = vector.broadcast %c10_i32 : i32 to vector<48x128xi32>
    %21 = arith.cmpi slt, %6, %20 : vector<48x128xi32>
    %22 = math.exp %5 : vector<48x128xf32>
    %23 = arith.select %21, %5, %22 : vector<48x128xi1>, vector<48x128xf32>
    %24 = arith.select %8, %19, %23 : vector<48x128xi1>, vector<48x128xf32>
    %c0_8 = arith.constant 0 : index
    %c0_9 = arith.constant 0 : index
    %25 = vector.load %arg4[%c0_8, %c0_9] : memref<48x128xf32, #tpu.memory_space<vmem>>, vector<48x128xf32>
    tpu.vector_store %arg4[%c0_8, %c0_9], %24 {strides = array<i32>} : memref<48x128xf32, #tpu.memory_space<vmem>>, vector<48x128xf32>,
    return
  }
  func.func @transform_0(%arg0: i32) -> (i32, i32) {
    %c0_i32 = arith.constant 0 : i32
    %c0_i32_0 = arith.constant 0 : i32
    return %arg0, %c0_i32 : i32, i32
  }
  func.func @transform_1(%arg0: i32) -> (i32, i32) {
    %c0_i32 = arith.constant 0 : i32
    %c0_i32_0 = arith.constant 0 : i32
    %c0_i32_1 = arith.constant 0 : i32
    return %c0_i32, %c0_i32_0 : i32, i32
  }
  func.func @transform_2(%arg0: i32) -> (i32, i32) {
    %c0_i32 = arith.constant 0 : i32
    %c0_i32_0 = arith.constant 0 : i32
    %c0_i32_1 = arith.constant 0 : i32
    return %c0_i32, %c0_i32_0 : i32, i32
  }
  func.func @transform_3(%arg0: i32) -> (i32, i32) {
    %c0_i32 = arith.constant 0 : i32
    %c0_i32_0 = arith.constant 0 : i32
    return %arg0, %c0_i32 : i32, i32
  }
}

</mosaic_0001>

<llo_original>
// kernel: tpu_custom_call.1
$region0: #{tpu_custom_call.1}
  #allocation0 [shape = 'u32[]', space=smem, size = 0x4, offset = 0x4, fixed_abs, tag = 'smem constant byte address 0x4 - core index']
  #allocation1 [shape = 'u32[72,128]{1,0:T(1,128)}', space=vmem, size = 0x9000, scoped, tag = 'internal scratch']
  %s0 = inlined_call_operand.vmem [shape: f32[96,32], index: 0, kind: input, shape index: {}]
  %s1 = inlined_call_operand.vmem [shape: f32[32,128], index: 1, kind: input, shape index: {}]
  %s2 = inlined_call_operand.vmem [shape: f32[1,128], index: 2, kind: input, shape index: {}]
  %s3 = inlined_call_operand.hbm [shape: f32[96,128], index: 3, kind: output, shape index: {}]
  %s4 = sld [smem:[#allocation0]]
  $region45: #{tpu_custom_call.1} parent=0
    _
  %s6 = ssub.s32 1, %s4
  %s7 = scalar_select 0, %s6, %s4
  $region1: #{tpu_custom_call.1} parent=0
    #allocation2 [shape = 'u8[49152]{0}', space=vmem, size = 0xc000, scoped, tag = 'output window, operand 0']
    #allocation3 [shape = 's32[2]{0}', space=sflag, size = 0x8, scoped, tag = 'scoped memory for tpu_custom_call.1']
    %8 = vsyncpa [#allocation3], 0
    %s9 = scalar_lea.sflag [#allocation3], 1
    %10 = vsyncpa %s9, 0
    loop: start=0, step=1, limit=4
    $region2: #{tpu_custom_call.1} parent=1 // loop_pre_header
      _
    $region3: #{tpu_custom_call.1} parent=1 // loop_header
      %s12 = sphi 0, %s16
      %p13 = scmp.ge.s32.totalorder %s12, 4
      %s22 = sphi 0, %s24
      %s25 = sphi 0, %s22
      %s26 = sphi 0, %s25
      %s42 = sphi 0, %s26
      %s46 = sphi 0, %s46
      %s48 = sphi 0, %s46
      %s49 = sphi 0, %s48
      %s63 = sphi 0, %s49
      %s67 = sphi 0, %s67
      %s69 = sphi 0, %s67
      %s70 = sphi 0, %s69
      %s84 = sphi 0, %s70
      %s90 = sphi 0, %s92
      %s93 = sphi 0, %s90
      %s94 = sphi 0, %s93
      %s110 = sphi 0, %s94
    $region4: #{tpu_custom_call.1} parent=1 // loop_header_branch
      %15 = sbr.rel (%p13) target = $region8
    $region5: #{tpu_custom_call.1} parent=1 // loop_body
      %s17 = ssub.s32 %s12, 1
      %s18 = ssub.s32 %s12, 2
      %s19 = sadd.s32 %s12, 1
      %s20 = ssub.s32 %s12, %s19
      %p21 = scmp.eq.s32.totalorder %s20, 0
      %s23 = sadd.s32 %s22, 1
      %s24 = scalar_select %p21, %s22, %s23
      %p27 = pneg %p21
      %p28 = scmp.eq.s32.totalorder %s12, 1
      %p29 = por %p27, %p28
      %p30 = scmp.ne.s32.totalorder %s22, %s25
      %p31 = scmp.eq.s32.totalorder %s12, 0
      %p32 = por %p30, %p31
      %p33 = scmp.ne.s32.totalorder %s22, %s25
      %p34 = scmp.eq.s32.totalorder %s17, 1
      %p35 = por %p33, %p34
      %p36 = scmp.ne.s32.totalorder %s25, %s26
      %p37 = scmp.eq.s32.totalorder %s17, 0
      %p38 = por %p36, %p37
      %p39 = scmp.ne.s32.totalorder %s25, %s26
      %p40 = scmp.eq.s32.totalorder %s18, 1
      %p41 = por %p39, %p40
      %p43 = scmp.ne.s32.totalorder %s26, %s42
      %p44 = scmp.eq.s32.totalorder %s18, 0
      %p45 = por %p43, %p44
      %s47 = sadd.s32 %s46, 1
      %p50 = scmp.eq.s32.totalorder %s12, 1
      %p51 = scmp.ne.s32.totalorder %s46, %s48
      %p52 = scmp.eq.s32.totalorder %s12, 0
      %p53 = por %p51, %p52
      %p54 = scmp.ne.s32.totalorder %s46, %s48
      %p55 = scmp.eq.s32.totalorder %s17, 1
      %p56 = por %p54, %p55
      %p57 = scmp.ne.s32.totalorder %s48, %s49
      %p58 = scmp.eq.s32.totalorder %s17, 0
      %p59 = por %p57, %p58
      %p60 = scmp.ne.s32.totalorder %s48, %s49
      %p61 = scmp.eq.s32.totalorder %s18, 1
      %p62 = por %p60, %p61
      %p64 = scmp.ne.s32.totalorder %s49, %s63
      %p65 = scmp.eq.s32.totalorder %s18, 0
      %p66 = por %p64, %p65
      %s68 = sadd.s32 %s67, 1
      %p71 = scmp.eq.s32.totalorder %s12, 1
      %p72 = scmp.ne.s32.totalorder %s67, %s69
      %p73 = scmp.eq.s32.totalorder %s12, 0
      %p74 = por %p72, %p73
      %p75 = scmp.ne.s32.totalorder %s67, %s69
      %p76 = scmp.eq.s32.totalorder %s17, 1
      %p77 = por %p75, %p76
      %p78 = scmp.ne.s32.totalorder %s69, %s70
      %p79 = scmp.eq.s32.totalorder %s17, 0
      %p80 = por %p78, %p79
      %p81 = scmp.ne.s32.totalorder %s69, %s70
      %p82 = scmp.eq.s32.totalorder %s18, 1
      %p83 = por %p81, %p82
      %p85 = scmp.ne.s32.totalorder %s70, %s84
      %p86 = scmp.eq.s32.totalorder %s18, 0
      %p87 = por %p85, %p86
      %s88 = ssub.s32 %s12, %s19
      %p89 = scmp.eq.s32.totalorder %s88, 0
      %s91 = sadd.s32 %s90, 1
      %s92 = scalar_select %p89, %s90, %s91
      %p95 = pneg %p89
      %p96 = scmp.eq.s32.totalorder %s12, 1
      %p97 = por %p95, %p96
      %p98 = scmp.ne.s32.totalorder %s90, %s93
      %p99 = scmp.eq.s32.totalorder %s12, 0
      %p100 = por %p98, %p99
      %p101 = scmp.ne.s32.totalorder %s90, %s93
      %p102 = scmp.eq.s32.totalorder %s17, 1
      %p103 = por %p101, %p102
      %p104 = scmp.ne.s32.totalorder %s93, %s94
      %p105 = scmp.eq.s32.totalorder %s17, 0
      %p106 = por %p104, %p105
      %p107 = scmp.ne.s32.totalorder %s93, %s94
      %p108 = scmp.eq.s32.totalorder %s18, 1
      %p109 = por %p107, %p108
      %p111 = scmp.ne.s32.totalorder %s94, %s110
      %p112 = scmp.eq.s32.totalorder %s18, 0
      %p113 = por %p111, %p112
      %p114 = scmp.le.s32.totalorder 1, %s12
      %p115 = scmp.lt.s32.totalorder %s12, 3
      %p116 = pnand %p114, %p115
      %p117 = pneg %p116
      // Predicated region
      $region9: #{tpu_custom_call.1} parent=5 // pred_check
        _
      $region10: #{tpu_custom_call.1} parent=5 // pred_check_branch
        %119 = sbr.rel (%p116) target = $region12
      $region11: #{tpu_custom_call.1} parent=5 // pred_region
        %s120 = ssub.s32 %s12, 1
        // Predicated region
        $region13: #{tpu_custom_call.1} parent=11 // pred_check
          %p121 = pneg %p59
        $region14: #{tpu_custom_call.1} parent=11 // pred_check_branch
          %123 = sbr.rel (%p121) target = $region16
        $region15: #{tpu_custom_call.1} parent=11 // pred_region
          _
        $region16: #{tpu_custom_call.1} parent=11 // pred_fallthru
          _
        // Predicated region
        $region17: #{tpu_custom_call.1} parent=11 // pred_check
          %p124 = pneg %p80
        $region18: #{tpu_custom_call.1} parent=11 // pred_check_branch
          %126 = sbr.rel (%p124) target = $region20
        $region19: #{tpu_custom_call.1} parent=11 // pred_region
          _
        $region20: #{tpu_custom_call.1} parent=11 // pred_fallthru
          _
      $region12: #{tpu_custom_call.1} parent=5 // pred_fallthru
        _
      %p127 = scmp.lt.s32.totalorder %s12, 2
      // Predicated region
      $region21: #{tpu_custom_call.1} parent=5 // pred_check
        %p128 = pneg %p127
      $region22: #{tpu_custom_call.1} parent=5 // pred_check_branch
        %130 = sbr.rel (%p128) target = $region24
      $region23: #{tpu_custom_call.1} parent=5 // pred_region
        // Predicated region
        $region25: #{tpu_custom_call.1} parent=23 // pred_check
          %p131 = pneg %p32
        $region26: #{tpu_custom_call.1} parent=23 // pred_check_branch
          %133 = sbr.rel (%p131) target = $region28
        $region27: #{tpu_custom_call.1} parent=23 // pred_region
          %s134 = smul.u32 6, %s12
          %p135 = scmp.lt.s32.totalorder %s134, 11
          %s136 = scalar_select %p135, %s134, 11
          %s137 = smul.addr %s136, 8
          %s138 = scalar_lea.vmem %s0, %s137
          %s139 = smul.u32 6, %s12
        $region28: #{tpu_custom_call.1} parent=23 // pred_fallthru
          _
      $region24: #{tpu_custom_call.1} parent=5 // pred_fallthru
        _
      %p140 = scmp.le.s32.totalorder 1, %s12
      %p141 = scmp.lt.s32.totalorder %s12, 3
      %p142 = pnand %p140, %p141
      %p143 = pneg %p142
      // Predicated region
      $region29: #{tpu_custom_call.1} parent=5 // pred_check
        _
      $region30: #{tpu_custom_call.1} parent=5 // pred_check_branch
        %145 = sbr.rel (%p142) target = $region32
      $region31: #{tpu_custom_call.1} parent=5 // pred_region
        %s146 = ssub.s32 %s12, 1
        %s147 = smul.u32 6, %s17
        %p148 = scmp.lt.s32.totalorder %s147, 11
        %s149 = scalar_select %p148, %s147, 11
        %s150 = smul.addr %s149, 8
        %s151 = scalar_lea.vmem %s0, %s150
        %p152 = pneg %p38
        %p153 = pneg %p35
        %p154 = pneg %p59
        %p155 = pneg %p56
        %p156 = pneg %p80
        %p157 = pneg %p77
        %p158 = pneg %p106
        %p159 = pneg %p103
        %s160 = sand.u32 %s93, 1
        %s161 = scalar_lea.sflag [#allocation3], %s160
        %s162 = sand.u32 %s93, 1
        %s163 = smul.addr %s162, 48
        %s164 = scalar_lea.vmem [#allocation2], %s163
        %s165 = smul.u32 6, %s17
        %p166 = scmp.lt.s32.totalorder %s165, 11
        %s167 = scalar_select %p166, %s165, 11
        %s168 = smul.addr %s167, 8
        %s169 = scalar_lea.vmem %s0, %s168
        %s170 = smul.u32 6, %s17
        %s171 = smul.u32 6, %s17
        %v172 = vld [vmem:[%s169] sm:$0xff]
        %v173 = vld [vmem:[%s169 + $0x8] sm:$0xff]
        %v174 = vld [vmem:[%s169 + $0x10] sm:$0xff]
        %v175 = vld [vmem:[%s169 + $0x18] sm:$0xff]
        %v176 = vld [vmem:[%s169 + $0x20] sm:$0xff]
        %v177 = vld [vmem:[%s169 + $0x28] sm:$0xff]
        %v178 = vld [vmem:[%s1] sm:$0xff]
        %v179 = vld [vmem:[%s1 + $0x8] sm:$0xff]
        %v180 = vld [vmem:[%s1 + $0x10] sm:$0xff]
        %v181 = vld [vmem:[%s1 + $0x18] sm:$0xff]
        %v182 = vld [vmem:[%s2] sm:$0x1]
        %v184 = vperm.slane %v182, 0
        %vm186 = vcmask 261120
        %v188 = vsel %vm186, %v172, 0
        %v191 = vsel %vm186, %v173, 0
        %v194 = vsel %vm186, %v174, 0
        %v197 = vsel %vm186, %v175, 0
        %v200 = vsel %vm186, %v176, 0
        %v203 = vsel %vm186, %v177, 0
        %205 = vmatpush.msra.mxu0 0.0
        %206 = vmatpush.msra.mxu0 0.0
        %207 = vmatpush.msra.mxu0 0.0
        %208 = vmatpush.msra.mxu0 0.0
        %209 = vmatpush.msra.mxu0 0.0
        %210 = vmatpush.msra.mxu0 0.0
        %211 = vmatpush.msra.mxu0 0.0
        %212 = vmatpush.msra.mxu0 0.0
        %213 = vmatpush.msra.mxu0 0.0
        %214 = vmatpush.msra.mxu0 0.0
        %215 = vmatpush.msra.mxu0 0.0
        %216 = vmatpush.msra.mxu0 0.0
        %217 = vmatpush.msra.mxu0 %v181
        %218 = vmatpush.msra.mxu0 %v180
        %219 = vmatpush.msra.mxu0 %v179
        %220 = vmatpush.msra.mxu0 %v178
        %221 = vmatmul.f32.gmra.mxu0 %v188
        %v222 = vpop.f32.mrf.mxu0
        %v223 = vadd.f32 %v184, %v222
        %224 = vmatmul.f32.gmra.mxu0 %v191
        %v225 = vpop.f32.mrf.mxu0
        %v226 = vadd.f32 %v184, %v225
        %227 = vmatmul.f32.gmra.mxu0 %v194
        %v228 = vpop.f32.mrf.mxu0
        %v229 = vadd.f32 %v184, %v228
        %230 = vmatmul.f32.gmra.mxu0 %v197
        %v231 = vpop.f32.mrf.mxu0
        %v232 = vadd.f32 %v184, %v231
        %233 = vmatmul.f32.gmra.mxu0 %v200
        %v234 = vpop.f32.mrf.mxu0
        %v235 = vadd.f32 %v184, %v234
        %236 = vmatmul.f32.gmra.mxu0 %v203
        %v237 = vpop.f32.mrf.mxu0
        %v238 = vadd.f32 %v184, %v237
        %239 = vdwg.mxu0
        %v240 = vlaneseq
        %v241 = vand.u32 %v240, 127
        %vm242 = vcmp.lt.s32.totalorder %v241, 5
        %v243 = vsel %vm242, %v223, -1e+30
        %v244 = vsel %vm242, %v226, -1e+30
        %v245 = vsel %vm242, %v229, -1e+30
        %v246 = vsel %vm242, %v232, -1e+30
        %v247 = vsel %vm242, %v235, -1e+30
        %v248 = vsel %vm242, %v238, -1e+30
        %249 = vmax.xlane.f32.xlu0 %v243
        %v250 = vpop.xlane.xlu0 %249
        %251 = vmax.xlane.f32.xlu0 %v244
        %v252 = vpop.xlane.xlu0 %251
        %253 = vmax.xlane.f32.xlu0 %v245
        %v254 = vpop.xlane.xlu0 %253
        %255 = vmax.xlane.f32.xlu0 %v246
        %v256 = vpop.xlane.xlu0 %255
        %257 = vmax.xlane.f32.xlu0 %v247
        %v258 = vpop.xlane.xlu0 %257
        %259 = vmax.xlane.f32.xlu0 %v248
        %v260 = vpop.xlane.xlu0 %259
        %v261 = vsub.f32 %v243, %v250
        %v262 = vsub.f32 %v244, %v252
        %v263 = vsub.f32 %v245, %v254
        %v264 = vsub.f32 %v246, %v256
        %v265 = vsub.f32 %v247, %v258
        %v266 = vsub.f32 %v248, %v260
        %v267 = vmul.f32 %v261, 1.442695
        %v268 = vpow.pop %v267
        %v269 = vmul.f32 %v262, 1.442695
        %v270 = vpow.pop %v269
        %v271 = vmul.f32 %v263, 1.442695
        %v272 = vpow.pop %v271
        %v273 = vmul.f32 %v264, 1.442695
        %v274 = vpow.pop %v273
        %v275 = vmul.f32 %v265, 1.442695
        %v276 = vpow.pop %v275
        %v277 = vmul.f32 %v266, 1.442695
        %v278 = vpow.pop %v277
        %279 = vadd.xlane.f32.xlu0 %v268
        %v280 = vpop.xlane.xlu0 %279
        %281 = vadd.xlane.f32.xlu0 %v270
        %v282 = vpop.xlane.xlu0 %281
        %283 = vadd.xlane.f32.xlu0 %v272
        %v284 = vpop.xlane.xlu0 %283
        %285 = vadd.xlane.f32.xlu0 %v274
        %v286 = vpop.xlane.xlu0 %285
        %287 = vadd.xlane.f32.xlu0 %v276
        %v288 = vpop.xlane.xlu0 %287
        %289 = vadd.xlane.f32.xlu0 %v278
        %v290 = vpop.xlane.xlu0 %289
        %v291 = vrcp.pop %v280
        %v292 = vmul.f32 %v280, %v291
        %v293 = vsub.f32 1.0, %v292
        %v294 = vmul.f32 %v291, %v293
        %v295 = vadd.f32 %v291, %v294
        %vm296 = vweird.f32 %v280
        %vm297 = vweird.f32 %v291
        %vm298 = vmor %vm296, %vm297
        %v299 = vsel %vm298, %v291, %v295
        %v300 = vand.u32 2147483647, %v280
        %vm301 = vcmp.eq.f32.partialorder %v300, 8.507059e+37
        %v302 = vand.u32 %v280, 2147483648
        %v303 = vor.u32 1.1754944e-38, %v302
        %v304 = vsel %vm301, %v303, %v299
        %v305 = vmul.f32 %v268, %v304
        %v306 = vrcp.pop %v282
        %v307 = vmul.f32 %v282, %v306
        %v308 = vsub.f32 1.0, %v307
        %v309 = vmul.f32 %v306, %v308
        %v310 = vadd.f32 %v306, %v309
        %vm311 = vweird.f32 %v282
        %vm312 = vweird.f32 %v306
        %vm313 = vmor %vm311, %vm312
        %v314 = vsel %vm313, %v306, %v310
        %v315 = vand.u32 2147483647, %v282
        %vm316 = vcmp.eq.f32.partialorder %v315, 8.507059e+37
        %v317 = vand.u32 %v282, 2147483648
        %v318 = vor.u32 1.1754944e-38, %v317
        %v319 = vsel %vm316, %v318, %v314
        %v320 = vmul.f32 %v270, %v319
        %v321 = vrcp.pop %v284
        %v322 = vmul.f32 %v284, %v321
        %v323 = vsub.f32 1.0, %v322
        %v324 = vmul.f32 %v321, %v323
        %v325 = vadd.f32 %v321, %v324
        %vm326 = vweird.f32 %v284
        %vm327 = vweird.f32 %v321
        %vm328 = vmor %vm326, %vm327
        %v329 = vsel %vm328, %v321, %v325
        %v330 = vand.u32 2147483647, %v284
        %vm331 = vcmp.eq.f32.partialorder %v330, 8.507059e+37
        %v332 = vand.u32 %v284, 2147483648
        %v333 = vor.u32 1.1754944e-38, %v332
        %v334 = vsel %vm331, %v333, %v329
        %v335 = vmul.f32 %v272, %v334
        %v336 = vrcp.pop %v286
        %v337 = vmul.f32 %v286, %v336
        %v338 = vsub.f32 1.0, %v337
        %v339 = vmul.f32 %v336, %v338
        %v340 = vadd.f32 %v336, %v339
        %vm341 = vweird.f32 %v286
        %vm342 = vweird.f32 %v336
        %vm343 = vmor %vm341, %vm342
        %v344 = vsel %vm343, %v336, %v340
        %v345 = vand.u32 2147483647, %v286
        %vm346 = vcmp.eq.f32.partialorder %v345, 8.507059e+37
        %v347 = vand.u32 %v286, 2147483648
        %v348 = vor.u32 1.1754944e-38, %v347
        %v349 = vsel %vm346, %v348, %v344
        %v350 = vmul.f32 %v274, %v349
        %v351 = vrcp.pop %v288
        %v352 = vmul.f32 %v288, %v351
        %v353 = vsub.f32 1.0, %v352
        %v354 = vmul.f32 %v351, %v353
        %v355 = vadd.f32 %v351, %v354
        %vm356 = vweird.f32 %v288
        %vm357 = vweird.f32 %v351
        %vm358 = vmor %vm356, %vm357
        %v359 = vsel %vm358, %v351, %v355
        %v360 = vand.u32 2147483647, %v288
        %vm361 = vcmp.eq.f32.partialorder %v360, 8.507059e+37
        %v362 = vand.u32 %v288, 2147483648
        %v363 = vor.u32 1.1754944e-38, %v362
        %v364 = vsel %vm361, %v363, %v359
        %v365 = vmul.f32 %v276, %v364
        %v366 = vrcp.pop %v290
        %v367 = vmul.f32 %v290, %v366
        %v368 = vsub.f32 1.0, %v367
        %v369 = vmul.f32 %v366, %v368
        %v370 = vadd.f32 %v366, %v369
        %vm371 = vweird.f32 %v290
        %vm372 = vweird.f32 %v366
        %vm373 = vmor %vm371, %vm372
        %v374 = vsel %vm373, %v366, %v370
        %v375 = vand.u32 2147483647, %v290
        %vm376 = vcmp.eq.f32.partialorder %v375, 8.507059e+37
        %v377 = vand.u32 %v290, 2147483648
        %v378 = vor.u32 1.1754944e-38, %v377
        %v379 = vsel %vm376, %v378, %v374
        %v380 = vmul.f32 %v278, %v379
        %vm381 = vcmp.lt.s32.totalorder %v241, 10
        %v382 = vmul.f32 %v223, 1.442695
        %v383 = vpow.pop %v382
        %v384 = vmul.f32 %v226, 1.442695
        %v385 = vpow.pop %v384
        %v386 = vmul.f32 %v229, 1.442695
        %v387 = vpow.pop %v386
        %v388 = vmul.f32 %v232, 1.442695
        %v389 = vpow.pop %v388
        %v390 = vmul.f32 %v235, 1.442695
        %v391 = vpow.pop %v390
        %v392 = vmul.f32 %v238, 1.442695
        %v393 = vpow.pop %v392
        %v394 = vsel %vm381, %v223, %v383
        %v395 = vsel %vm381, %v226, %v385
        %v396 = vsel %vm381, %v229, %v387
        %v397 = vsel %vm381, %v232, %v389
        %v398 = vsel %vm381, %v235, %v391
        %v399 = vsel %vm381, %v238, %v393
        %v400 = vsel %vm242, %v305, %v394
        %v401 = vsel %vm242, %v320, %v395
        %v402 = vsel %vm242, %v335, %v396
        %v403 = vsel %vm242, %v350, %v397
        %v404 = vsel %vm242, %v365, %v398
        %v405 = vsel %vm242, %v380, %v399
        %406 = vst [vmem:[%s164] sm:$0xff] %v400
        %407 = vst [vmem:[%s164 + $0x8] sm:$0xff] %v401
        %408 = vst [vmem:[%s164 + $0x10] sm:$0xff] %v402
        %409 = vst [vmem:[%s164 + $0x18] sm:$0xff] %v403
        %410 = vst [vmem:[%s164 + $0x20] sm:$0xff] %v404
        %411 = vst [vmem:[%s164 + $0x28] sm:$0xff] %v405
        %s412 = sand.u32 %s93, 1
        %s413 = scalar_lea.sflag [#allocation3], %s412
        %s414 = sand.u32 %s93, 1
        %s415 = smul.addr %s414, 48
        %s416 = scalar_lea.vmem [#allocation2], %s415
        // Predicated region
        $region33: #{tpu_custom_call.1} parent=31 // pred_check
          %p417 = pneg %p103
        $region34: #{tpu_custom_call.1} parent=31 // pred_check_branch
          %419 = sbr.rel (%p417) target = $region36
        $region35: #{tpu_custom_call.1} parent=31 // pred_region
          %s420 = smul.u32 6, %s17
          %422 = vsyncadd %s413, 0
          %s423 = smul.addr %s420, 8
          %s424 = scalar_lea.hbm %s3, %s423
          %s425 = sshll.u32 %s416, 4
          %s426 = int_to_ptr.vmem [resolvable:$true] %s425
          %s427 = sshll.u32 %s424, 4
          %s428 = int_to_ptr.hbm [resolvable:$true] %s427
          %433 = dma.vmem_to_hbm [thread:$0]  %s426, 768, %s428, %s413, 128, 128, 8
        $region36: #{tpu_custom_call.1} parent=31 // pred_fallthru
          _
      $region32: #{tpu_custom_call.1} parent=5 // pred_fallthru
        _
      %p434 = scmp.le.s32.totalorder 2, %s12
      // Predicated region
      $region37: #{tpu_custom_call.1} parent=5 // pred_check
        %p435 = pneg %p434
      $region38: #{tpu_custom_call.1} parent=5 // pred_check_branch
        %437 = sbr.rel (%p435) target = $region40
      $region39: #{tpu_custom_call.1} parent=5 // pred_region
        %s438 = ssub.s32 %s12, 2
        // Predicated region
        $region41: #{tpu_custom_call.1} parent=39 // pred_check
          %p439 = pneg %p109
        $region42: #{tpu_custom_call.1} parent=39 // pred_check_branch
          %441 = sbr.rel (%p439) target = $region44
        $region43: #{tpu_custom_call.1} parent=39 // pred_region
          %s442 = sand.u32 %s94, 1
          %s443 = scalar_lea.sflag [#allocation3], %s442
          %s444 = sand.u32 %s94, 1
          %s445 = smul.addr %s444, 48
          %s446 = scalar_lea.vmem [#allocation2], %s445
          %448 = dma.done %s443, 768
        $region44: #{tpu_custom_call.1} parent=39 // pred_fallthru
          _
      $region40: #{tpu_custom_call.1} parent=5 // pred_fallthru
        _
    $region6: #{tpu_custom_call.1} parent=1 // loop_footer
      %s16 = sadd.s32 1, %s12
    $region7: #{tpu_custom_call.1} parent=1 // loop_footer_branch
      %11 = sbr.rel target = $region3
    $region8: #{tpu_custom_call.1} parent=1 // loop_exit
      _
    %449 = vsyncpa [#allocation3], 1
    %s450 = scalar_lea.sflag [#allocation3], 1
    %451 = vsyncpa %s450, 1

</llo_original>
